<compile_context>
chip_gen: v5e
topology: v5e:2x2
jax: 0.10.0
libtpu: 0.0.40
codegen_flags: <defaults>
</compile_context>

<pallas_src>
import math

import numpy as np
import jax
import jax.numpy as jnp
from jax.experimental import pallas as pl
from jax.experimental.pallas import tpu as pltpu

NUM_GRID_MODULES = 6
NUM_PLACE_CELLS = 100
OUTPUT_SIZE = 4
GRID_DIM = NUM_GRID_MODULES * 3        # 18
GRID_PAD = 24                          # 18 rounded up to a multiple of 8
FEAT_PAD = 128                         # padded combined feature dim (24 + 104)
PLACE_PAD = FEAT_PAD - GRID_PAD        # 104 (100 place cells + 4 zero rows)


def spatial_kernel(pos_ref, cvec_ref, w_ref, gamma_ref, out_ref):
    # pos_ref  : (2, TB)     row 0 = x, row 1 = y (batch on lanes)
    # cvec_ref : (128, 8)    packed per-feature constants (see pack_params)
    # w_ref    : (4, 128)    zero-padded integration weights
    # gamma_ref: (1, 1) SMEM -1 / (2 * sigma^2)
    # out_ref  : (4, TB)
    x = pos_ref[0:1, :]                                   # (1, TB)
    y = pos_ref[1:2, :]                                   # (1, TB)

    # --- Grid-cell modules (all 6 fused): cos(fx*x + fy*y + phase) -> (24, TB)
    # Rows 18:24 are zero-padded (cos(0)=1) and hit zero weight columns.
    fx = cvec_ref[0:GRID_PAD, 0:1]                        # (24, 1)
    fy = cvec_ref[0:GRID_PAD, 1:2]
    ph = cvec_ref[0:GRID_PAD, 2:3]
    grid_feat = jnp.cos(fx * x + fy * y + ph)             # (24, TB)

    # --- Place cells: exp(gamma * ||pos - pf||^2) -> (104, TB)
    # Rows 100:104 use zero-padded fields and hit zero weight columns.
    pfx = cvec_ref[GRID_PAD:FEAT_PAD, 0:1]                # (104, 1)
    pfy = cvec_ref[GRID_PAD:FEAT_PAD, 1:2]
    gamma = gamma_ref[0, 0]
    d2 = (x - pfx) ** 2 + (y - pfy) ** 2                  # (104, TB)
    place_feat = jnp.exp(d2 * gamma)                      # (104, TB)

    # --- Integration layer: single MXU matmul over the padded 128-feature axis.
    feats = jnp.concatenate([grid_feat, place_feat], axis=0)   # (128, TB)
    bias = cvec_ref[0:OUTPUT_SIZE, 3:4]                   # (4, 1)
    out = jnp.dot(w_ref[...], feats, preferred_element_type=jnp.float32) + bias
    out_ref[...] = out.astype(out_ref.dtype)


def spatial_network(pos, packed_params):
    """pos: (B, 2) f32 -> (B, 4) f32, matching SpatialNetwork.forward."""
    cvec, w_pad, gamma = packed_params
    B = pos.shape[0]
    b_pad = ((B + 127) // 128) * 128
    # Largest batch tile (<= 2048 lanes) that evenly divides the padded batch.
    tb = next(t for t in (2048, 1024, 512, 256, 128) if b_pad % t == 0)

    pos_t = jnp.zeros((2, b_pad), jnp.float32).at[:, :B].set(
        pos.T.astype(jnp.float32))

    out_t = pl.pallas_call(
        spatial_kernel,
        out_shape=jax.ShapeDtypeStruct((OUTPUT_SIZE, b_pad), jnp.float32),
        grid=(b_pad // tb,),
        in_specs=[
            pl.BlockSpec((2, tb), lambda i: (0, i)),                  # pos tile
            pl.BlockSpec((FEAT_PAD, 8), lambda i: (0, 0)),            # constants
            pl.BlockSpec((OUTPUT_SIZE, FEAT_PAD), lambda i: (0, 0)),  # weights
            pl.BlockSpec(memory_space=pltpu.MemorySpace.SMEM),        # gamma
        ],
        out_specs=pl.BlockSpec((OUTPUT_SIZE, tb), lambda i: (0, i)),
        compiler_params=pltpu.CompilerParams(
            dimension_semantics=("parallel",)),
    )(pos_t, cvec, w_pad, gamma)

    return out_t[:, :B].T                                  # (B, 4)


def init_params(key):
    """Natural (PyTorch-equivalent) parameters of SpatialNetwork."""
    angles = jnp.array([0.0, np.pi / 3.0, 2.0 * np.pi / 3.0], dtype=jnp.float32)
    scales = [0.5 * 1.4 ** i for i in range(NUM_GRID_MODULES)]
    fx = jnp.concatenate([jnp.cos(angles) * s for s in scales]).astype(jnp.float32)
    fy = jnp.concatenate([jnp.sin(angles) * s for s in scales]).astype(jnp.float32)
    ph = jnp.zeros((GRID_DIM,), jnp.float32)               # phases init to zero

    k_pf, k_w, k_b = jax.random.split(key, 3)
    place_fields = (jax.random.uniform(k_pf, (NUM_PLACE_CELLS, 2),
                                       dtype=jnp.float32) * 2.0 - 1.0)
    sigma = jnp.float32(0.1)

    fan_in = GRID_DIM + NUM_PLACE_CELLS                    # 118
    bound = 1.0 / math.sqrt(fan_in)
    W = jax.random.uniform(k_w, (OUTPUT_SIZE, fan_in),
                           minval=-bound, maxval=bound, dtype=jnp.float32)
    b = jax.random.uniform(k_b, (OUTPUT_SIZE,),
                           minval=-bound, maxval=bound, dtype=jnp.float32)
    return fx, fy, ph, place_fields, sigma, W, b


def pack_params(params):
    """Pack natural params into the kernel's fused, padded layout."""
    fx, fy, ph, place_fields, sigma, W, b = params

    cvec = jnp.zeros((FEAT_PAD, 8), jnp.float32)
    cvec = cvec.at[0:GRID_DIM, 0].set(fx)
    cvec = cvec.at[0:GRID_DIM, 1].set(fy)
    cvec = cvec.at[0:GRID_DIM, 2].set(ph)
    cvec = cvec.at[GRID_PAD:GRID_PAD + NUM_PLACE_CELLS, 0].set(place_fields[:, 0])
    cvec = cvec.at[GRID_PAD:GRID_PAD + NUM_PLACE_CELLS, 1].set(place_fields[:, 1])
    cvec = cvec.at[0:OUTPUT_SIZE, 3].set(b)

    w_pad = jnp.zeros((OUTPUT_SIZE, FEAT_PAD), jnp.float32)
    w_pad = w_pad.at[:, 0:GRID_DIM].set(W[:, :GRID_DIM])
    w_pad = w_pad.at[:, GRID_PAD:GRID_PAD + NUM_PLACE_CELLS].set(W[:, GRID_DIM:])

    gamma = jnp.reshape(-1.0 / (2.0 * sigma * sigma), (1, 1)).astype(jnp.float32)
    return cvec, w_pad, gamma


def reference(pos, params):
    """Pure-JAX forward matching the PyTorch module."""
    fx, fy, ph, place_fields, sigma, W, b = params
    x = pos[:, 0:1]
    y = pos[:, 1:2]
    grid = jnp.cos(x * fx[None, :] + y * fy[None, :] + ph[None, :])   # (B, 18)
    d2 = jnp.sum((pos[:, None, :] - place_fields[None, :, :]) ** 2, axis=-1)
    place = jnp.exp(-d2 / (2.0 * sigma ** 2))                          # (B, 100)
    feats = jnp.concatenate([grid, place], axis=-1)                    # (B, 118)
    return feats @ W.T + b[None, :]


if __name__ == "__main__":
    key = jax.random.PRNGKey(0)
    k_param, k_pos1, k_pos2 = jax.random.split(key, 3)
    params = init_params(k_param)
    packed = pack_params(params)

    # Small batch (single tile) and a non-multiple-of-128 batch (padding +
    # multi-tile grid) to exercise both wrapper paths.
    for batch, kp in ((8, k_pos1), (300, k_pos2)):
        pos = jax.random.uniform(kp, (batch, 2), minval=-1.0, maxval=1.0,
                                 dtype=jnp.float32)
        out = jax.block_until_ready(spatial_network(pos, packed))
        ref = reference(pos, params)
        np.testing.assert_allclose(np.asarray(out), np.asarray(ref),
                                   rtol=1e-4, atol=1e-5)
    print("KERNEL_OK")
</pallas_src>

<mosaic_0001>
module attributes {stable_mosaic.version = 11 : i64} {
  func.func @spatial_kernel(%arg0: i32, %arg1: memref<2x128xf32, #tpu.memory_space<vmem>>, %arg2: memref<128x8xf32, #tpu.memory_space<vmem>>, %arg3: memref<4x128xf32, #tpu.memory_space<vmem>>, %arg4: memref<1x1xf32, #tpu.memory_space<smem>>, %arg5: memref<4x128xf32, #tpu.memory_space<vmem>>) attributes {dimension_semantics = [#tpu.dimension_semantics<parallel>], iteration_bounds = array<i64: 1>, scalar_prefetch = 0 : i64, scratch_operands = 0 : i64, tpu.core_type = #tpu.core_type<tc>, window_params = [{transform_indices = @transform_0, window_bounds = array<i64: 2, 128>}, {pipeline_mode = #tpu.pipeline_mode<synchronous>, transform_indices = @transform_1, window_bounds = array<i64: 128, 8>}, {pipeline_mode = #tpu.pipeline_mode<synchronous>, transform_indices = @transform_2, window_bounds = array<i64: 4, 128>}, {transform_indices = @transform_3, window_bounds = array<i64: 1, 1>}, {transform_indices = @transform_4, window_bounds = array<i64: 4, 128>}]} {
    %c0 = arith.constant 0 : index
    %c0_0 = arith.constant 0 : index
    %0 = vector.load %arg1[%c0, %c0_0] : memref<2x128xf32, #tpu.memory_space<vmem>>, vector<1x128xf32>
    %c1 = arith.constant 1 : index
    %c0_1 = arith.constant 0 : index
    %1 = vector.load %arg1[%c1, %c0_1] : memref<2x128xf32, #tpu.memory_space<vmem>>, vector<1x128xf32>
    %c0_2 = arith.constant 0 : index
    %c0_3 = arith.constant 0 : index
    %2 = vector.load %arg2[%c0_2, %c0_3] : memref<128x8xf32, #tpu.memory_space<vmem>>, vector<24x1xf32>
    %c0_4 = arith.constant 0 : index
    %c1_5 = arith.constant 1 : index
    %3 = vector.load %arg2[%c0_4, %c1_5] : memref<128x8xf32, #tpu.memory_space<vmem>>, vector<24x1xf32>
    %c0_6 = arith.constant 0 : index
    %c2 = arith.constant 2 : index
    %4 = vector.load %arg2[%c0_6, %c2] : memref<128x8xf32, #tpu.memory_space<vmem>>, vector<24x1xf32>
    %5 = vector.broadcast %2 : vector<24x1xf32> to vector<24x128xf32>
    %6 = vector.broadcast %0 : vector<1x128xf32> to vector<24x128xf32>
    %7 = arith.mulf %5, %6 : vector<24x128xf32>
    %8 = vector.broadcast %3 : vector<24x1xf32> to vector<24x128xf32>
    %9 = vector.broadcast %1 : vector<1x128xf32> to vector<24x128xf32>
    %10 = arith.mulf %8, %9 : vector<24x128xf32>
    %11 = arith.addf %7, %10 : vector<24x128xf32>
    %12 = vector.broadcast %4 : vector<24x1xf32> to vector<24x128xf32>
    %13 = arith.addf %11, %12 : vector<24x128xf32>
    %14 = math.cos %13 : vector<24x128xf32>
    %c24 = arith.constant 24 : index
    %c0_7 = arith.constant 0 : index
    %15 = vector.load %arg2[%c24, %c0_7] : memref<128x8xf32, #tpu.memory_space<vmem>>, vector<104x1xf32>
    %c24_8 = arith.constant 24 : index
    %c1_9 = arith.constant 1 : index
    %16 = vector.load %arg2[%c24_8, %c1_9] : memref<128x8xf32, #tpu.memory_space<vmem>>, vector<104x1xf32>
    %c0_10 = arith.constant 0 : index
    %c0_11 = arith.constant 0 : index
    %17 = memref.load %arg4[%c0_10, %c0_11] : memref<1x1xf32, #tpu.memory_space<smem>>
    %18 = vector.broadcast %0 : vector<1x128xf32> to vector<104x128xf32>
    %19 = vector.broadcast %15 : vector<104x1xf32> to vector<104x128xf32>
    %20 = arith.subf %18, %19 : vector<104x128xf32>
    %21 = arith.mulf %20, %20 : vector<104x128xf32>
    %22 = vector.broadcast %1 : vector<1x128xf32> to vector<104x128xf32>
    %23 = vector.broadcast %16 : vector<104x1xf32> to vector<104x128xf32>
    %24 = arith.subf %22, %23 : vector<104x128xf32>
    %25 = arith.mulf %24, %24 : vector<104x128xf32>
    %26 = arith.addf %21, %25 : vector<104x128xf32>
    %27 = vector.broadcast %17 : f32 to vector<104x128xf32>
    %28 = arith.mulf %26, %27 : vector<104x128xf32>
    %29 = math.exp %28 : vector<104x128xf32>
    %30 = tpu.concatenate %14, %29 in 0 : vector<24x128xf32>, vector<104x128xf32> -> vector<128x128xf32>
    %c0_12 = arith.constant 0 : index
    %c3 = arith.constant 3 : index
    %31 = vector.load %arg2[%c0_12, %c3] : memref<128x8xf32, #tpu.memory_space<vmem>>, vector<4x1xf32>
    %c0_13 = arith.constant 0 : index
    %c0_14 = arith.constant 0 : index
    %32 = vector.load %arg3[%c0_13, %c0_14] : memref<4x128xf32, #tpu.memory_space<vmem>>, vector<4x128xf32>
    %cst = arith.constant dense<0.000000e+00> : vector<4x128xf32>
    %33 = tpu.matmul %32, %30, %cst {dimension_numbers = #tpu.dot_dimension_numbers<[1], [0], [0], [1], [0, 0, 1, 1], [], []>} : vector<4x128xf32>, vector<128x128xf32>, vector<4x128xf32> -> vector<4x128xf32>
    %34 = vector.broadcast %31 : vector<4x1xf32> to vector<4x128xf32>
    %35 = arith.addf %33, %34 : vector<4x128xf32>
    %c0_15 = arith.constant 0 : index
    %c0_16 = arith.constant 0 : index
    %36 = vector.load %arg5[%c0_15, %c0_16] : memref<4x128xf32, #tpu.memory_space<vmem>>, vector<4x128xf32>
    tpu.vector_store %arg5[%c0_15, %c0_16], %35 {strides = array<i32>} : memref<4x128xf32, #tpu.memory_space<vmem>>, vector<4x128xf32>,
    return
  }
  func.func @transform_0(%arg0: i32) -> (i32, i32) {
    %c0_i32 = arith.constant 0 : i32
    %c0_i32_0 = arith.constant 0 : i32
    return %c0_i32, %arg0 : i32, i32
  }
  func.func @transform_1(%arg0: i32) -> (i32, i32) {
    %c0_i32 = arith.constant 0 : i32
    %c0_i32_0 = arith.constant 0 : i32
    %c0_i32_1 = arith.constant 0 : i32
    return %c0_i32, %c0_i32_0 : i32, i32
  }
  func.func @transform_2(%arg0: i32) -> (i32, i32) {
    %c0_i32 = arith.constant 0 : i32
    %c0_i32_0 = arith.constant 0 : i32
    %c0_i32_1 = arith.constant 0 : i32
    return %c0_i32, %c0_i32_0 : i32, i32
  }
  func.func @transform_3(%arg0: i32) -> (i32, i32) {
    %c0_i32 = arith.constant 0 : i32
    %c0_i32_0 = arith.constant 0 : i32
    %c0_i32_1 = arith.constant 0 : i32
    return %c0_i32, %c0_i32_0 : i32, i32
  }
  func.func @transform_4(%arg0: i32) -> (i32, i32) {
    %c0_i32 = arith.constant 0 : i32
    %c0_i32_0 = arith.constant 0 : i32
    return %c0_i32, %arg0 : i32, i32
  }
}

</mosaic_0001>

<llo_original>
// kernel: tpu_custom_call.1
$region0: #{tpu_custom_call.1}
  #allocation0 [shape = 'u32[]', space=smem, size = 0x4, offset = 0x4, fixed_abs, tag = 'smem constant byte address 0x4 - core index']
  #allocation1 [shape = 'u32[72,128]{1,0:T(1,128)}', space=vmem, size = 0x9000, scoped, tag = 'internal scratch']
  #allocation2 [shape = 'f32[1,1]{1,0:T(1,128)S(6)}', space=smem, size = 0x200, scoped, tag = 'scoped memory for tpu_custom_call.1']
  %s0 = inlined_call_operand.vmem [shape: f32[2,128], index: 0, kind: input, shape index: {}]
  %s1 = inlined_call_operand.vmem [shape: f32[128,8], index: 1, kind: input, shape index: {}]
  %s2 = inlined_call_operand.vmem [shape: f32[4,128], index: 2, kind: input, shape index: {}]
  %s3 = inlined_call_operand.<no memory space> [shape: f32[1,1], index: 3, kind: input, shape index: {}]
  %s4 = inlined_call_operand.hbm [shape: f32[4,128], index: 4, kind: output, shape index: {}]
  %s5 = sld [smem:[#allocation0]]
  $region26: #{tpu_custom_call.1} parent=0
    _
  %s7 = ssub.s32 1, %s5
  %s8 = scalar_select 0, %s7, %s5
  %9 = sst [smem:[#allocation2]] %s3
  $region1: #{tpu_custom_call.1} parent=0
    #allocation3 [shape = 'u8[2048]{0}', space=vmem, size = 0x800, scoped, tag = 'output window, operand 0, single buffered']
    #allocation4 [shape = 's32[1]{0}', space=sflag, size = 0x4, scoped, tag = 'scoped memory for tpu_custom_call.1']
    %10 = vsyncpa [#allocation4], 0
    // Predicated region
    $region2: #{tpu_custom_call.1} parent=1 // pred_check
      _
    $region3: #{tpu_custom_call.1} parent=1 // pred_check_branch
      %12 = sbr.rel (0) target = $region5
    $region4: #{tpu_custom_call.1} parent=1 // pred_region
      _
    $region5: #{tpu_custom_call.1} parent=1 // pred_fallthru
      _
    // Predicated region
    $region6: #{tpu_custom_call.1} parent=1 // pred_check
      _
    $region7: #{tpu_custom_call.1} parent=1 // pred_check_branch
      %14 = sbr.rel (0) target = $region9
    $region8: #{tpu_custom_call.1} parent=1 // pred_region
      _
    $region9: #{tpu_custom_call.1} parent=1 // pred_fallthru
      _
    // Predicated region
    $region10: #{tpu_custom_call.1} parent=1 // pred_check
      _
    $region11: #{tpu_custom_call.1} parent=1 // pred_check_branch
      %16 = sbr.rel (0) target = $region13
    $region12: #{tpu_custom_call.1} parent=1 // pred_region
      _
    $region13: #{tpu_custom_call.1} parent=1 // pred_fallthru
      _
    // Predicated region
    $region14: #{tpu_custom_call.1} parent=1 // pred_check
      _
    $region15: #{tpu_custom_call.1} parent=1 // pred_check_branch
      %18 = sbr.rel (0) target = $region17
    $region16: #{tpu_custom_call.1} parent=1 // pred_region
      _
    $region17: #{tpu_custom_call.1} parent=1 // pred_fallthru
      _
    %v19 = vld [vmem:[%s0] sm:$0x1]
    %v20 = vld [vmem:[%s0 + $0x1] sm:$0x1]
    %v21 = vld [vmem:[%s1] sm:$0xff]
    %v22 = vld [vmem:[%s1 + $0x8] sm:$0xff]
    %v23 = vld [vmem:[%s1 + $0x10] sm:$0xff]
    %25 = vset.pattern.permute.xlu0 0
    %26 = vperm.xlu0 %25, %v21
    %v27 = vpop.permute.xlu0 %26
    %30 = vset.pattern.permute.xlu0 0
    %31 = vperm.xlu0 %30, %v22
    %v32 = vpop.permute.xlu0 %31
    %35 = vset.pattern.permute.xlu0 0
    %36 = vperm.xlu0 %35, %v23
    %v37 = vpop.permute.xlu0 %36
    %v39 = vperm.slane %v19, 0
    %v40 = vmul.f32 %v27, %v39
    %v41 = vmul.f32 %v32, %v39
    %v42 = vmul.f32 %v37, %v39
    %43 = vset.pattern.permute.xlu0 1
    %44 = vperm.xlu0 %43, %v21
    %v45 = vpop.permute.xlu0 %44
    %47 = vset.pattern.permute.xlu0 1
    %48 = vperm.xlu0 %47, %v22
    %v49 = vpop.permute.xlu0 %48
    %51 = vset.pattern.permute.xlu0 1
    %52 = vperm.xlu0 %51, %v23
    %v53 = vpop.permute.xlu0 %52
    %v55 = vperm.slane %v20, 0
    %v56 = vmul.f32 %v45, %v55
    %v57 = vmul.f32 %v49, %v55
    %v58 = vmul.f32 %v53, %v55
    %v59 = vadd.f32 %v40, %v56
    %v60 = vadd.f32 %v41, %v57
    %v61 = vadd.f32 %v42, %v58
    %62 = vset.pattern.permute.xlu0 2
    %63 = vperm.xlu0 %62, %v21
    %v64 = vpop.permute.xlu0 %63
    %66 = vset.pattern.permute.xlu0 2
    %67 = vperm.xlu0 %66, %v22
    %v68 = vpop.permute.xlu0 %67
    %70 = vset.pattern.permute.xlu0 2
    %71 = vperm.xlu0 %70, %v23
    %v72 = vpop.permute.xlu0 %71
    %v74 = vadd.f32 %v59, %v64
    %v75 = vadd.f32 %v60, %v68
    %v76 = vadd.f32 %v61, %v72
    %v77 = vand.u32 2147483647, %v74
    %vm78 = vcmp.le.f32.partialorder %v77, 0.7853982
    %vm79 = vcmp.lt.s32.totalorder %v74, 0
    %v80 = vand.u32 %v74, 2139095040
    %v81 = vshrl.u32 %v80, 23
    %v82 = vsub.s32 %v81, 127
    %v83 = vand.u32 2147483647, %v74
    %v84 = vand.u32 %v83, 8388607
    %v85 = vor.u32 %v84, 8388608
    %v86 = vsub.s32 0, %v85
    %v87 = vadd.s32 %v82, 1
    %vm88 = vcmp.gt.s32.totalorder %v87, 0
    %v89 = vsel %vm88, %v87, 0
    %v90 = vshrl.u32 %v89, 5
    %v91 = vand.u32 %v89, 31
    %v92 = vsub.s32 32, %v91
    %v93 = vshrl.u32 683565275, %v92
    %v94 = vshll.u32 683565275, %v91
    %v95 = vshrl.u32 2475754826, %v92
    %v96 = vor.u32 %v94, %v95
    %v97 = vshll.u32 2475754826, %v91
    %v98 = vshrl.u32 2131351028, %v92
    %v99 = vor.u32 %v97, %v98
    %v100 = vshll.u32 2131351028, %v91
    %v101 = vshrl.u32 2102212464, %v92
    %v102 = vor.u32 %v100, %v101
    %v103 = vshll.u32 2102212464, %v91
    %v104 = vshrl.u32 920167782, %v92
    %v105 = vor.u32 %v103, %v104
    %v106 = vshll.u32 920167782, %v91
    %v107 = vshrl.u32 1326507024, %v92
    %v108 = vor.u32 %v106, %v107
    %vm109 = vcmp.lt.s32.totalorder %v90, 1
    %vm110 = vcmp.lt.s32.totalorder %v90, 2
    %vm111 = vcmp.lt.s32.totalorder %v90, 3
    %vm112 = vcmp.lt.s32.totalorder %v90, 4
    %v113 = vsel %vm109, %v93, %v96
    %v114 = vsel %vm112, %v102, 2102212464
    %v115 = vsel %vm111, %v99, %v114
    %v116 = vsel %vm110, %v113, %v115
    %v117 = vsel %vm109, %v96, %v99
    %v118 = vsel %vm112, %v105, 920167782
    %v119 = vsel %vm111, %v102, %v118
    %v120 = vsel %vm110, %v117, %v119
    %v121 = vsel %vm109, %v99, %v102
    %v122 = vsel %vm112, %v108, 1326507024
    %v123 = vsel %vm111, %v105, %v122
    %v124 = vsel %vm110, %v121, %v123
    %v125 = vshll.u32 %v85, 8
    %v126 = vand.u32 %v125, 65535
    %v127 = vshrl.u32 %v125, 16
    %v128 = vand.u32 %v124, 65535
    %v129 = vshrl.u32 %v124, 16
    %v130 = vmul.u32 %v126, %v128
    %v131 = vmul.u32 %v126, %v129
    %v132 = vmul.u32 %v127, %v128
    %v133 = vmul.u32 %v127, %v129
    %v134 = vshll.u32 %v131, 16
    %v135 = vshrl.u32 %v131, 16
    %v136 = vshll.u32 %v132, 16
    %v137 = vshrl.u32 %v132, 16
    %vm138 = vc.u32 %v130, %v134
    %v139 = vsel %vm138, 1, 0
    %v140 = vadd.s32 %v130, %v134
    %v141 = vadd.s32 %v133, %v139
    %vm142 = vc.u32 %v140, %v136
    %v143 = vsel %vm142, 1, 0
    %v144 = vadd.s32 %v140, %v136
    %v145 = vadd.s32 %v141, %v143
    %v146 = vadd.s32 %v145, %v135
    %v147 = vadd.s32 %v146, %v137
    %v148 = vand.u32 %v125, 65535
    %v149 = vshrl.u32 %v125, 16
    %v150 = vand.u32 %v120, 65535
    %v151 = vshrl.u32 %v120, 16
    %v152 = vmul.u32 %v148, %v150
    %v153 = vmul.u32 %v148, %v151
    %v154 = vmul.u32 %v149, %v150
    %v155 = vmul.u32 %v149, %v151
    %v156 = vshll.u32 %v153, 16
    %v157 = vshrl.u32 %v153, 16
    %v158 = vshll.u32 %v154, 16
    %v159 = vshrl.u32 %v154, 16
    %vm160 = vc.u32 %v152, %v156
    %v161 = vsel %vm160, 1, 0
    %v162 = vadd.s32 %v152, %v156
    %v163 = vadd.s32 %v155, %v161
    %vm164 = vc.u32 %v162, %v158
    %v165 = vsel %vm164, 1, 0
    %v166 = vadd.s32 %v162, %v158
    %v167 = vadd.s32 %v163, %v165
    %v168 = vadd.s32 %v167, %v157
    %v169 = vadd.s32 %v168, %v159
    %v170 = vmul.u32 %v125, %v116
    %v171 = vadd.s32 %v147, %v166
    %vm172 = vc.u32 %v147, %v166
    %v173 = vadd.s32 %v169, 1
    %v174 = vsel %vm172, %v173, %v169
    %v175 = vadd.s32 %v170, %v174
    %v176 = vadd.s32 %v175, 536870912
    %v177 = vshrl.u32 %v176, 30
    %v178 = vshll.u32 %v177, 30
    %v179 = vsub.s32 %v175, %v178
    %vm180 = vcmp.lt.s32.totalorder %v179, 0
    %v181 = vsub.s32 0, %v179
    %v182 = vsel %vm180, %v181, %v179
    %v183 = vclz %v182
    %v184 = vsub.s32 %v183, 2
    %vm185 = vcmp.gt.s32.totalorder 0, %v184
    %v186 = vsel %vm185, 0, %v184
    %v187 = vsub.s32 32, %v186
    %v188 = vshll.u32 %v179, %v186
    %v189 = vshrl.u32 %v171, %v187
    %v190 = vor.u32 %v188, %v189
    %v191 = vsub.s32 4294967266, %v186
    %v192 = vadd.s32 %v191, 127
    %v193 = vshll.u32 %v192, 23
    %v194 = vor.u32 4788187, %v193
    %v195 = vand.u32 2147483647, %v194
    %v197 = vcvt.s32.f32 %v190
    %v198 = vmul.f32 %v197, %v195
    %v199 = vxor.u32 %v198, 2147483648
    %v200 = vsel %vm79, %v199, %v198
    %v201 = vsub.s32 4, %v177
    %v202 = vsel %vm79, %v201, %v177
    %v203 = vsel %vm78, %v74, %v200
    %v204 = vsel %vm78, 0, %v202
    %v205 = vmul.f32 %v203, %v203
    %v206 = vmul.f32 %v205, -0.001358992
    %v207 = vadd.f32 %v206, 0.041655596
    %v208 = vmul.f32 %v205, %v207
    %v209 = vadd.f32 %v208, -0.4999988
    %v210 = vmul.f32 %v205, %v209
    %v211 = vadd.f32 1.0, %v210
    %v212 = vmul.f32 %v203, %v203
    %v213 = vmul.f32 %v212, -0.00019511016
    %v214 = vadd.f32 %v213, 0.008332121
    %v215 = vmul.f32 %v212, %v214
    %v216 = vadd.f32 %v215, -0.16666654
    %v217 = vmul.f32 %v212, %v216
    %v218 = vadd.f32 %v217, 1.0
    %v219 = vmul.f32 %v218, %v203
    %vm220 = vweird.f32 %v74
    %v221 = vand.u32 %v204, 3
    %vm222 = vcmp.lt.s32.totalorder %v221, 2
    %vm223 = vcmp.eq.s32.totalorder %v221, 0
    %v224 = vxor.u32 %v219, 2147483648
    %v225 = vsel %vm223, %v211, %v224
    %vm226 = vcmp.eq.s32.totalorder %v221, 2
    %v227 = vxor.u32 %v211, 2147483648
    %v228 = vsel %vm226, %v227, %v219
    %v229 = vsel %vm222, %v225, %v228
    %v230 = vsel %vm220, nan, %v229
    %v231 = vand.u32 2147483647, %v75
    %vm232 = vcmp.le.f32.partialorder %v231, 0.7853982
    %vm233 = vcmp.lt.s32.totalorder %v75, 0
    %v234 = vand.u32 %v75, 2139095040
    %v235 = vshrl.u32 %v234, 23
    %v236 = vsub.s32 %v235, 127
    %v237 = vand.u32 2147483647, %v75
    %v238 = vand.u32 %v237, 8388607
    %v239 = vor.u32 %v238, 8388608
    %v240 = vsub.s32 0, %v239
    %v241 = vadd.s32 %v236, 1
    %vm242 = vcmp.gt.s32.totalorder %v241, 0
    %v243 = vsel %vm242, %v241, 0
    %v244 = vshrl.u32 %v243, 5
    %v245 = vand.u32 %v243, 31
    %v246 = vsub.s32 32, %v245
    %v247 = vshrl.u32 683565275, %v246
    %v248 = vshll.u32 683565275, %v245
    %v249 = vshrl.u32 2475754826, %v246
    %v250 = vor.u32 %v248, %v249
    %v251 = vshll.u32 2475754826, %v245
    %v252 = vshrl.u32 2131351028, %v246
    %v253 = vor.u32 %v251, %v252
    %v254 = vshll.u32 2131351028, %v245
    %v255 = vshrl.u32 2102212464, %v246
    %v256 = vor.u32 %v254, %v255
    %v257 = vshll.u32 2102212464, %v245
    %v258 = vshrl.u32 920167782, %v246
    %v259 = vor.u32 %v257, %v258
    %v260 = vshll.u32 920167782, %v245
    %v261 = vshrl.u32 1326507024, %v246
    %v262 = vor.u32 %v260, %v261
    %vm263 = vcmp.lt.s32.totalorder %v244, 1
    %vm264 = vcmp.lt.s32.totalorder %v244, 2
    %vm265 = vcmp.lt.s32.totalorder %v244, 3
    %vm266 = vcmp.lt.s32.totalorder %v244, 4
    %v267 = vsel %vm263, %v247, %v250
    %v268 = vsel %vm266, %v256, 2102212464
    %v269 = vsel %vm265, %v253, %v268
    %v270 = vsel %vm264, %v267, %v269
    %v271 = vsel %vm263, %v250, %v253
    %v272 = vsel %vm266, %v259, 920167782
    %v273 = vsel %vm265, %v256, %v272
    %v274 = vsel %vm264, %v271, %v273
    %v275 = vsel %vm263, %v253, %v256
    %v276 = vsel %vm266, %v262, 1326507024
    %v277 = vsel %vm265, %v259, %v276
    %v278 = vsel %vm264, %v275, %v277
    %v279 = vshll.u32 %v239, 8
    %v280 = vand.u32 %v279, 65535
    %v281 = vshrl.u32 %v279, 16
    %v282 = vand.u32 %v278, 65535
    %v283 = vshrl.u32 %v278, 16
    %v284 = vmul.u32 %v280, %v282
    %v285 = vmul.u32 %v280, %v283
    %v286 = vmul.u32 %v281, %v282
    %v287 = vmul.u32 %v281, %v283
    %v288 = vshll.u32 %v285, 16
    %v289 = vshrl.u32 %v285, 16
    %v290 = vshll.u32 %v286, 16
    %v291 = vshrl.u32 %v286, 16
    %vm292 = vc.u32 %v284, %v288
    %v293 = vsel %vm292, 1, 0
    %v294 = vadd.s32 %v284, %v288
    %v295 = vadd.s32 %v287, %v293
    %vm296 = vc.u32 %v294, %v290
    %v297 = vsel %vm296, 1, 0
    %v298 = vadd.s32 %v294, %v290
    %v299 = vadd.s32 %v295, %v297
    %v300 = vadd.s32 %v299, %v289
    %v301 = vadd.s32 %v300, %v291
    %v302 = vand.u32 %v279, 65535
    %v303 = vshrl.u32 %v279, 16
    %v304 = vand.u32 %v274, 65535
    %v305 = vshrl.u32 %v274, 16
    %v306 = vmul.u32 %v302, %v304
    %v307 = vmul.u32 %v302, %v305
    %v308 = vmul.u32 %v303, %v304
    %v309 = vmul.u32 %v303, %v305
    %v310 = vshll.u32 %v307, 16
    %v311 = vshrl.u32 %v307, 16
    %v312 = vshll.u32 %v308, 16
    %v313 = vshrl.u32 %v308, 16
    %vm314 = vc.u32 %v306, %v310
    %v315 = vsel %vm314, 1, 0
    %v316 = vadd.s32 %v306, %v310
    %v317 = vadd.s32 %v309, %v315
    %vm318 = vc.u32 %v316, %v312
    %v319 = vsel %vm318, 1, 0
    %v320 = vadd.s32 %v316, %v312
    %v321 = vadd.s32 %v317, %v319
    %v322 = vadd.s32 %v321, %v311
    %v323 = vadd.s32 %v322, %v313
    %v324 = vmul.u32 %v279, %v270
    %v325 = vadd.s32 %v301, %v320
    %vm326 = vc.u32 %v301, %v320
    %v327 = vadd.s32 %v323, 1
    %v328 = vsel %vm326, %v327, %v323
    %v329 = vadd.s32 %v324, %v328
    %v330 = vadd.s32 %v329, 536870912
    %v331 = vshrl.u32 %v330, 30
    %v332 = vshll.u32 %v331, 30
    %v333 = vsub.s32 %v329, %v332
    %vm334 = vcmp.lt.s32.totalorder %v333, 0
    %v335 = vsub.s32 0, %v333
    %v336 = vsel %vm334, %v335, %v333
    %v337 = vclz %v336
    %v338 = vsub.s32 %v337, 2
    %vm339 = vcmp.gt.s32.totalorder 0, %v338
    %v340 = vsel %vm339, 0, %v338
    %v341 = vsub.s32 32, %v340
    %v342 = vshll.u32 %v333, %v340
    %v343 = vshrl.u32 %v325, %v341
    %v344 = vor.u32 %v342, %v343
    %v345 = vsub.s32 4294967266, %v340
    %v346 = vadd.s32 %v345, 127
    %v347 = vshll.u32 %v346, 23
    %v348 = vor.u32 4788187, %v347
    %v349 = vand.u32 2147483647, %v348
    %v351 = vcvt.s32.f32 %v344
    %v352 = vmul.f32 %v351, %v349
    %v353 = vxor.u32 %v352, 2147483648
    %v354 = vsel %vm233, %v353, %v352
    %v355 = vsub.s32 4, %v331
    %v356 = vsel %vm233, %v355, %v331
    %v357 = vsel %vm232, %v75, %v354
    %v358 = vsel %vm232, 0, %v356
    %v359 = vmul.f32 %v357, %v357
    %v360 = vmul.f32 %v359, -0.001358992
    %v361 = vadd.f32 %v360, 0.041655596
    %v362 = vmul.f32 %v359, %v361
    %v363 = vadd.f32 %v362, -0.4999988
    %v364 = vmul.f32 %v359, %v363
    %v365 = vadd.f32 1.0, %v364
    %v366 = vmul.f32 %v357, %v357
    %v367 = vmul.f32 %v366, -0.00019511016
    %v368 = vadd.f32 %v367, 0.008332121
    %v369 = vmul.f32 %v366, %v368
    %v370 = vadd.f32 %v369, -0.16666654
    %v371 = vmul.f32 %v366, %v370
    %v372 = vadd.f32 %v371, 1.0
    %v373 = vmul.f32 %v372, %v357
    %vm374 = vweird.f32 %v75
    %v375 = vand.u32 %v358, 3
    %vm376 = vcmp.lt.s32.totalorder %v375, 2
    %vm377 = vcmp.eq.s32.totalorder %v375, 0
    %v378 = vxor.u32 %v373, 2147483648
    %v379 = vsel %vm377, %v365, %v378
    %vm380 = vcmp.eq.s32.totalorder %v375, 2
    %v381 = vxor.u32 %v365, 2147483648
    %v382 = vsel %vm380, %v381, %v373
    %v383 = vsel %vm376, %v379, %v382
    %v384 = vsel %vm374, nan, %v383
    %v385 = vand.u32 2147483647, %v76
    %vm386 = vcmp.le.f32.partialorder %v385, 0.7853982
    %vm387 = vcmp.lt.s32.totalorder %v76, 0
    %v388 = vand.u32 %v76, 2139095040
    %v389 = vshrl.u32 %v388, 23
    %v390 = vsub.s32 %v389, 127
    %v391 = vand.u32 2147483647, %v76
    %v392 = vand.u32 %v391, 8388607
    %v393 = vor.u32 %v392, 8388608
    %v394 = vsub.s32 0, %v393
    %v395 = vadd.s32 %v390, 1
    %vm396 = vcmp.gt.s32.totalorder %v395, 0
    %v397 = vsel %vm396, %v395, 0
    %v398 = vshrl.u32 %v397, 5
    %v399 = vand.u32 %v397, 31
    %v400 = vsub.s32 32, %v399
    %v401 = vshrl.u32 683565275, %v400
    %v402 = vshll.u32 683565275, %v399
    %v403 = vshrl.u32 2475754826, %v400
    %v404 = vor.u32 %v402, %v403
    %v405 = vshll.u32 2475754826, %v399
    %v406 = vshrl.u32 2131351028, %v400
    %v407 = vor.u32 %v405, %v406
    %v408 = vshll.u32 2131351028, %v399
    %v409 = vshrl.u32 2102212464, %v400
    %v410 = vor.u32 %v408, %v409
    %v411 = vshll.u32 2102212464, %v399
    %v412 = vshrl.u32 920167782, %v400
    %v413 = vor.u32 %v411, %v412
    %v414 = vshll.u32 920167782, %v399
    %v415 = vshrl.u32 1326507024, %v400
    %v416 = vor.u32 %v414, %v415
    %vm417 = vcmp.lt.s32.totalorder %v398, 1
    %vm418 = vcmp.lt.s32.totalorder %v398, 2
    %vm419 = vcmp.lt.s32.totalorder %v398, 3
    %vm420 = vcmp.lt.s32.totalorder %v398, 4
    %v421 = vsel %vm417, %v401, %v404
    %v422 = vsel %vm420, %v410, 2102212464
    %v423 = vsel %vm419, %v407, %v422
    %v424 = vsel %vm418, %v421, %v423
    %v425 = vsel %vm417, %v404, %v407
    %v426 = vsel %vm420, %v413, 920167782
    %v427 = vsel %vm419, %v410, %v426
    %v428 = vsel %vm418, %v425, %v427
    %v429 = vsel %vm417, %v407, %v410
    %v430 = vsel %vm420, %v416, 1326507024
    %v431 = vsel %vm419, %v413, %v430
    %v432 = vsel %vm418, %v429, %v431
    %v433 = vshll.u32 %v393, 8
    %v434 = vand.u32 %v433, 65535
    %v435 = vshrl.u32 %v433, 16
    %v436 = vand.u32 %v432, 65535
    %v437 = vshrl.u32 %v432, 16
    %v438 = vmul.u32 %v434, %v436
    %v439 = vmul.u32 %v434, %v437
    %v440 = vmul.u32 %v435, %v436
    %v441 = vmul.u32 %v435, %v437
    %v442 = vshll.u32 %v439, 16
    %v443 = vshrl.u32 %v439, 16
    %v444 = vshll.u32 %v440, 16
    %v445 = vshrl.u32 %v440, 16
    %vm446 = vc.u32 %v438, %v442
    %v447 = vsel %vm446, 1, 0
    %v448 = vadd.s32 %v438, %v442
    %v449 = vadd.s32 %v441, %v447
    %vm450 = vc.u32 %v448, %v444
    %v451 = vsel %vm450, 1, 0
    %v452 = vadd.s32 %v448, %v444
    %v453 = vadd.s32 %v449, %v451
    %v454 = vadd.s32 %v453, %v443
    %v455 = vadd.s32 %v454, %v445
    %v456 = vand.u32 %v433, 65535
    %v457 = vshrl.u32 %v433, 16
    %v458 = vand.u32 %v428, 65535
    %v459 = vshrl.u32 %v428, 16
    %v460 = vmul.u32 %v456, %v458
    %v461 = vmul.u32 %v456, %v459
    %v462 = vmul.u32 %v457, %v458
    %v463 = vmul.u32 %v457, %v459
    %v464 = vshll.u32 %v461, 16
    %v465 = vshrl.u32 %v461, 16
    %v466 = vshll.u32 %v462, 16
    %v467 = vshrl.u32 %v462, 16
    %vm468 = vc.u32 %v460, %v464
    %v469 = vsel %vm468, 1, 0
    %v470 = vadd.s32 %v460, %v464
    %v471 = vadd.s32 %v463, %v469
    %vm472 = vc.u32 %v470, %v466
    %v473 = vsel %vm472, 1, 0
    %v474 = vadd.s32 %v470, %v466
    %v475 = vadd.s32 %v471, %v473
    %v476 = vadd.s32 %v475, %v465
    %v477 = vadd.s32 %v476, %v467
    %v478 = vmul.u32 %v433, %v424
    %v479 = vadd.s32 %v455, %v474
    %vm480 = vc.u32 %v455, %v474
    %v481 = vadd.s32 %v477, 1
    %v482 = vsel %vm480, %v481, %v477
    %v483 = vadd.s32 %v478, %v482
    %v484 = vadd.s32 %v483, 536870912
    %v485 = vshrl.u32 %v484, 30
    %v486 = vshll.u32 %v485, 30
    %v487 = vsub.s32 %v483, %v486
    %vm488 = vcmp.lt.s32.totalorder %v487, 0
    %v489 = vsub.s32 0, %v487
    %v490 = vsel %vm488, %v489, %v487
    %v491 = vclz %v490
    %v492 = vsub.s32 %v491, 2
    %vm493 = vcmp.gt.s32.totalorder 0, %v492
    %v494 = vsel %vm493, 0, %v492
    %v495 = vsub.s32 32, %v494
    %v496 = vshll.u32 %v487, %v494
    %v497 = vshrl.u32 %v479, %v495
    %v498 = vor.u32 %v496, %v497
    %v499 = vsub.s32 4294967266, %v494
    %v500 = vadd.s32 %v499, 127
    %v501 = vshll.u32 %v500, 23
    %v502 = vor.u32 4788187, %v501
    %v503 = vand.u32 2147483647, %v502
    %v505 = vcvt.s32.f32 %v498
    %v506 = vmul.f32 %v505, %v503
    %v507 = vxor.u32 %v506, 2147483648
    %v508 = vsel %vm387, %v507, %v506
    %v509 = vsub.s32 4, %v485
    %v510 = vsel %vm387, %v509, %v485
    %v511 = vsel %vm386, %v76, %v508
    %v512 = vsel %vm386, 0, %v510
    %v513 = vmul.f32 %v511, %v511
    %v514 = vmul.f32 %v513, -0.001358992
    %v515 = vadd.f32 %v514, 0.041655596
    %v516 = vmul.f32 %v513, %v515
    %v517 = vadd.f32 %v516, -0.4999988
    %v518 = vmul.f32 %v513, %v517
    %v519 = vadd.f32 1.0, %v518
    %v520 = vmul.f32 %v511, %v511
    %v521 = vmul.f32 %v520, -0.00019511016
    %v522 = vadd.f32 %v521, 0.008332121
    %v523 = vmul.f32 %v520, %v522
    %v524 = vadd.f32 %v523, -0.16666654
    %v525 = vmul.f32 %v520, %v524
    %v526 = vadd.f32 %v525, 1.0
    %v527 = vmul.f32 %v526, %v511
    %vm528 = vweird.f32 %v76
    %v529 = vand.u32 %v512, 3
    %vm530 = vcmp.lt.s32.totalorder %v529, 2
    %vm531 = vcmp.eq.s32.totalorder %v529, 0
    %v532 = vxor.u32 %v527, 2147483648
    %v533 = vsel %vm531, %v519, %v532
    %vm534 = vcmp.eq.s32.totalorder %v529, 2
    %v535 = vxor.u32 %v519, 2147483648
    %v536 = vsel %vm534, %v535, %v527
    %v537 = vsel %vm530, %v533, %v536
    %v538 = vsel %vm528, nan, %v537
    %v539 = vld [vmem:[%s1 + $0x18] sm:$0xff]
    %v540 = vld [vmem:[%s1 + $0x20] sm:$0xff]
    %v541 = vld [vmem:[%s1 + $0x28] sm:$0xff]
    %v542 = vld [vmem:[%s1 + $0x30] sm:$0xff]
    %v543 = vld [vmem:[%s1 + $0x38] sm:$0xff]
    %v544 = vld [vmem:[%s1 + $0x40] sm:$0xff]
    %v545 = vld [vmem:[%s1 + $0x48] sm:$0xff]
    %v546 = vld [vmem:[%s1 + $0x50] sm:$0xff]
    %v547 = vld [vmem:[%s1 + $0x58] sm:$0xff]
    %v548 = vld [vmem:[%s1 + $0x60] sm:$0xff]
    %v549 = vld [vmem:[%s1 + $0x68] sm:$0xff]
    %v550 = vld [vmem:[%s1 + $0x70] sm:$0xff]
    %v551 = vld [vmem:[%s1 + $0x78] sm:$0xff]
    %s552 = sld [smem:[#allocation2]]
    %554 = vset.pattern.permute.xlu0 0
    %555 = vperm.xlu0 %554, %v539
    %v556 = vpop.permute.xlu0 %555
    %559 = vset.pattern.permute.xlu0 0
    %560 = vperm.xlu0 %559, %v540
    %v561 = vpop.permute.xlu0 %560
    %564 = vset.pattern.permute.xlu0 0
    %565 = vperm.xlu0 %564, %v541
    %v566 = vpop.permute.xlu0 %565
    %569 = vset.pattern.permute.xlu0 0
    %570 = vperm.xlu0 %569, %v542
    %v571 = vpop.permute.xlu0 %570
    %574 = vset.pattern.permute.xlu0 0
    %575 = vperm.xlu0 %574, %v543
    %v576 = vpop.permute.xlu0 %575
    %579 = vset.pattern.permute.xlu0 0
    %580 = vperm.xlu0 %579, %v544
    %v581 = vpop.permute.xlu0 %580
    %584 = vset.pattern.permute.xlu0 0
    %585 = vperm.xlu0 %584, %v545
    %v586 = vpop.permute.xlu0 %585
    %589 = vset.pattern.permute.xlu0 0
    %590 = vperm.xlu0 %589, %v546
    %v591 = vpop.permute.xlu0 %590
    %594 = vset.pattern.permute.xlu0 0
    %595 = vperm.xlu0 %594, %v547
    %v596 = vpop.permute.xlu0 %595
    %599 = vset.pattern.permute.xlu0 0
    %600 = vperm.xlu0 %599, %v548
    %v601 = vpop.permute.xlu0 %600
    %604 = vset.pattern.permute.xlu0 0
    %605 = vperm.xlu0 %604, %v549
    %v606 = vpop.permute.xlu0 %605
    %609 = vset.pattern.permute.xlu0 0
    %610 = vperm.xlu0 %609, %v550
    %v611 = vpop.permute.xlu0 %610
    %614 = vset.pattern.permute.xlu0 0
    %615 = vperm.xlu0 %614, %v551
    %v616 = vpop.permute.xlu0 %615
    %v618 = vsub.f32 %v39, %v556
    %v619 = vsub.f32 %v39, %v561
    %v620 = vsub.f32 %v39, %v566
    %v621 = vsub.f32 %v39, %v571
    %v622 = vsub.f32 %v39, %v576
    %v623 = vsub.f32 %v39, %v581
    %v624 = vsub.f32 %v39, %v586
    %v625 = vsub.f32 %v39, %v591
    %v626 = vsub.f32 %v39, %v596
    %v627 = vsub.f32 %v39, %v601
    %v628 = vsub.f32 %v39, %v606
    %v629 = vsub.f32 %v39, %v611
    %v630 = vsub.f32 %v39, %v616
    %v631 = vmul.f32 %v618, %v618
    %v632 = vmul.f32 %v619, %v619
    %v633 = vmul.f32 %v620, %v620
    %v634 = vmul.f32 %v621, %v621
    %v635 = vmul.f32 %v622, %v622
    %v636 = vmul.f32 %v623, %v623
    %v637 = vmul.f32 %v624, %v624
    %v638 = vmul.f32 %v625, %v625
    %v639 = vmul.f32 %v626, %v626
    %v640 = vmul.f32 %v627, %v627
    %v641 = vmul.f32 %v628, %v628
    %v642 = vmul.f32 %v629, %v629
    %v643 = vmul.f32 %v630, %v630
    %644 = vset.pattern.permute.xlu0 1
    %645 = vperm.xlu0 %644, %v539
    %v646 = vpop.permute.xlu0 %645
    %648 = vset.pattern.permute.xlu0 1
    %649 = vperm.xlu0 %648, %v540
    %v650 = vpop.permute.xlu0 %649
    %652 = vset.pattern.permute.xlu0 1
    %653 = vperm.xlu0 %652, %v541
    %v654 = vpop.permute.xlu0 %653
    %656 = vset.pattern.permute.xlu0 1
    %657 = vperm.xlu0 %656, %v542
    %v658 = vpop.permute.xlu0 %657
    %660 = vset.pattern.permute.xlu0 1
    %661 = vperm.xlu0 %660, %v543
    %v662 = vpop.permute.xlu0 %661
    %664 = vset.pattern.permute.xlu0 1
    %665 = vperm.xlu0 %664, %v544
    %v666 = vpop.permute.xlu0 %665
    %668 = vset.pattern.permute.xlu0 1
    %669 = vperm.xlu0 %668, %v545
    %v670 = vpop.permute.xlu0 %669
    %672 = vset.pattern.permute.xlu0 1
    %673 = vperm.xlu0 %672, %v546
    %v674 = vpop.permute.xlu0 %673
    %676 = vset.pattern.permute.xlu0 1
    %677 = vperm.xlu0 %676, %v547
    %v678 = vpop.permute.xlu0 %677
    %680 = vset.pattern.permute.xlu0 1
    %681 = vperm.xlu0 %680, %v548
    %v682 = vpop.permute.xlu0 %681
    %684 = vset.pattern.permute.xlu0 1
    %685 = vperm.xlu0 %684, %v549
    %v686 = vpop.permute.xlu0 %685
    %688 = vset.pattern.permute.xlu0 1
    %689 = vperm.xlu0 %688, %v550
    %v690 = vpop.permute.xlu0 %689
    %692 = vset.pattern.permute.xlu0 1
    %693 = vperm.xlu0 %692, %v551
    %v694 = vpop.permute.xlu0 %693
    %v696 = vsub.f32 %v55, %v646
    %v697 = vsub.f32 %v55, %v650
    %v698 = vsub.f32 %v55, %v654
    %v699 = vsub.f32 %v55, %v658
    %v700 = vsub.f32 %v55, %v662
    %v701 = vsub.f32 %v55, %v666
    %v702 = vsub.f32 %v55, %v670
    %v703 = vsub.f32 %v55, %v674
    %v704 = vsub.f32 %v55, %v678
    %v705 = vsub.f32 %v55, %v682
    %v706 = vsub.f32 %v55, %v686
    %v707 = vsub.f32 %v55, %v690
    %v708 = vsub.f32 %v55, %v694
    %v709 = vmul.f32 %v696, %v696
    %v710 = vmul.f32 %v697, %v697
    %v711 = vmul.f32 %v698, %v698
    %v712 = vmul.f32 %v699, %v699
    %v713 = vmul.f32 %v700, %v700
    %v714 = vmul.f32 %v701, %v701
    %v715 = vmul.f32 %v702, %v702
    %v716 = vmul.f32 %v703, %v703
    %v717 = vmul.f32 %v704, %v704
    %v718 = vmul.f32 %v705, %v705
    %v719 = vmul.f32 %v706, %v706
    %v720 = vmul.f32 %v707, %v707
    %v721 = vmul.f32 %v708, %v708
    %v722 = vadd.f32 %v631, %v709
    %v723 = vadd.f32 %v632, %v710
    %v724 = vadd.f32 %v633, %v711
    %v725 = vadd.f32 %v634, %v712
    %v726 = vadd.f32 %v635, %v713
    %v727 = vadd.f32 %v636, %v714
    %v728 = vadd.f32 %v637, %v715
    %v729 = vadd.f32 %v638, %v716
    %v730 = vadd.f32 %v639, %v717
    %v731 = vadd.f32 %v640, %v718
    %v732 = vadd.f32 %v641, %v719
    %v733 = vadd.f32 %v642, %v720
    %v734 = vadd.f32 %v643, %v721
    %v735 = vstv %s552
    %v736 = vmul.f32 %v722, %v735
    %v737 = vmul.f32 %v723, %v735
    %v738 = vmul.f32 %v724, %v735
    %v739 = vmul.f32 %v725, %v735
    %v740 = vmul.f32 %v726, %v735
    %v741 = vmul.f32 %v727, %v735
    %v742 = vmul.f32 %v728, %v735
    %v743 = vmul.f32 %v729, %v735
    %v744 = vmul.f32 %v730, %v735
    %v745 = vmul.f32 %v731, %v735
    %v746 = vmul.f32 %v732, %v735
    %v747 = vmul.f32 %v733, %v735
    %v748 = vmul.f32 %v734, %v735
    %v749 = vmul.f32 %v736, 1.442695
    %v750 = vpow.pop %v749
    %v751 = vmul.f32 %v737, 1.442695
    %v752 = vpow.pop %v751
    %v753 = vmul.f32 %v738, 1.442695
    %v754 = vpow.pop %v753
    %v755 = vmul.f32 %v739, 1.442695
    %v756 = vpow.pop %v755
    %v757 = vmul.f32 %v740, 1.442695
    %v758 = vpow.pop %v757
    %v759 = vmul.f32 %v741, 1.442695
    %v760 = vpow.pop %v759
    %v761 = vmul.f32 %v742, 1.442695
    %v762 = vpow.pop %v761
    %v763 = vmul.f32 %v743, 1.442695
    %v764 = vpow.pop %v763
    %v765 = vmul.f32 %v744, 1.442695
    %v766 = vpow.pop %v765
    %v767 = vmul.f32 %v745, 1.442695
    %v768 = vpow.pop %v767
    %v769 = vmul.f32 %v746, 1.442695
    %v770 = vpow.pop %v769
    %v771 = vmul.f32 %v747, 1.442695
    %v772 = vpow.pop %v771
    %v773 = vmul.f32 %v748, 1.442695
    %v774 = vpow.pop %v773
    %v775 = vld [vmem:[%s1] sm:$0xf]
    %v776 = vld [vmem:[%s2] sm:$0xf]
    %778 = vset.pattern.permute.xlu0 3
    %779 = vperm.xlu0 %778, %v775
    %v780 = vpop.permute.xlu0 %779
    %782 = vmatpush.msra.mxu0 %v774
    %783 = vmatpush.msra.mxu0 %v772
    %784 = vmatpush.msra.mxu0 %v770
    %785 = vmatpush.msra.mxu0 %v768
    %786 = vmatpush.msra.mxu0 %v766
    %787 = vmatpush.msra.mxu0 %v764
    %788 = vmatpush.msra.mxu0 %v762
    %789 = vmatpush.msra.mxu0 %v760
    %790 = vmatpush.msra.mxu0 %v758
    %791 = vmatpush.msra.mxu0 %v756
    %792 = vmatpush.msra.mxu0 %v754
    %793 = vmatpush.msra.mxu0 %v752
    %794 = vmatpush.msra.mxu0 %v750
    %795 = vmatpush.msra.mxu0 %v538
    %796 = vmatpush.msra.mxu0 %v384
    %797 = vmatpush.msra.mxu0 %v230
    %798 = vmatmul.f32.gmra.mxu0 %v776
    %v799 = vpop.f32.mrf.mxu0
    %v800 = vadd.f32 %v780, %v799
    %801 = vdwg.mxu0
    %802 = vst [vmem:[#allocation3] sm:$0xf] %v800
    // Predicated region
    $region18: #{tpu_custom_call.1} parent=1 // pred_check
      _
    $region19: #{tpu_custom_call.1} parent=1 // pred_check_branch
      %804 = sbr.rel (0) target = $region21
    $region20: #{tpu_custom_call.1} parent=1 // pred_region
      %806 = vsyncadd [#allocation4], 0
      %s808 = sshll.u32 [#allocation3], 4
      %s809 = int_to_ptr.vmem [resolvable:$true] %s808
      %s810 = sshll.u32 %s4, 4
      %s811 = int_to_ptr.hbm [resolvable:$true] %s810
      %813 = dma.vmem_to_hbm [thread:$0]  %s809, 64, %s811, [#allocation4]
    $region21: #{tpu_custom_call.1} parent=1 // pred_fallthru
      _
    // Predicated region
    $region22: #{tpu_custom_call.1} parent=1 // pred_check
      _
    $region23: #{tpu_custom_call.1} parent=1 // pred_check_branch
      %815 = sbr.rel (0) target = $region25
    $region24: #{tpu_custom_call.1} parent=1 // pred_region
      %817 = dma.done [#allocation4], 64
    $region25: #{tpu_custom_call.1} parent=1 // pred_fallthru
      _
    %818 = vsyncpa [#allocation4], 1

</llo_original>
